<compile_context>
chip_gen: v7x
topology: tpu7x:2x2x1
jax: 0.10.0
libtpu: 0.0.40
codegen_flags: <defaults>
</compile_context>

<pallas_src>
import functools

import jax
import jax.numpy as jnp
from jax.experimental import pallas as pl
from jax.experimental.pallas import tpu as pltpu

# ---- module hyper-parameters (EffNetMSD.__init__ defaults) -------------------
FEATURE_DIM = 1000      # EfficientNet classifier output dim -> input of self.linear
NUM_CLASSES = 5
N_DROPOUTS = 10
P_DROP = 0.1

# ---- TPU tiling constants -----------------------------------------------------
LANE = 128
NC_PAD = 128                       # 5 -> 128: lane-dense logits (no masked partial stores)
MAX_TILE_S = 8192                  # cap on the spatial tile (lane multiple)
X_BUF_BYTES = 8 * 1024 * 1024      # per pipeline buffer budget for the streamed x tile


def _round_up(x, m):
    return (x + m - 1) // m * m


def _effnet_msd_kernel(x_ref, w_ref, g_ref, bias_ref, mask_ref, out_ref, acc_ref,
                       *, total_s, total_rows, mask_cols, mask_rows):
    """Grid: (batch blocks [parallel], spatial tiles [arbitrary/reduction]).

    x_ref    : VMEM (rows_blk, tile_s)   f32  image rows (row r = image*C + channel)
    w_ref    : VMEM (rows_blk, NC_PAD)   f32  fused head weight per row, already / (H*W)
    g_ref    : VMEM (b_blk, rows_blk)    f32  0/1 matrix summing each image's C rows
    bias_ref : VMEM (1, NC_PAD)          f32  fused head bias
    mask_ref : VMEM (b_blk, NC_PAD)      f32  mean multi-sample-dropout keep factor
    out_ref  : VMEM (b_blk, NC_PAD)      f32
    acc_ref  : VMEM (rows_blk, LANE)     f32  lane-folded spatial partial sums
    """
    rows_blk, tile_s = x_ref.shape
    n_chunks = tile_s // LANE
    b = pl.program_id(0)
    s = pl.program_id(1)

    if mask_cols:
        col_ids = jax.lax.broadcasted_iota(jnp.int32, (rows_blk, LANE), 1)

    # GAP phase 1: fold the tile into a lane-width partial sum with 128-aligned
    # VALU adds (no XLU, no full-tile scratch traffic).
    psum = None
    for k in range(n_chunks):
        chunk = x_ref[:, k * LANE:(k + 1) * LANE].astype(jnp.float32)
        if mask_cols:
            # zero the columns of the last (partial) spatial tile
            valid_cols = total_s - (s * tile_s + k * LANE)
            chunk = jnp.where(col_ids < valid_cols, chunk, 0.0)
        psum = chunk if psum is None else psum + chunk
    if mask_rows:
        # zero garbage rows of the last (partial) batch block
        row_ids = jax.lax.broadcasted_iota(jnp.int32, (rows_blk, LANE), 0)
        valid_rows = total_rows - b * rows_blk
        psum = jnp.where(row_ids < valid_rows, psum, 0.0)

    @pl.when(s == 0)
    def _init():
        acc_ref[...] = psum                       # write, don't zero-then-add

    @pl.when(s != 0)
    def _accumulate():
        acc_ref[...] = acc_ref[...] + psum

    @pl.when(s == pl.num_programs(1) - 1)
    def _finalize():
        # GAP phase 2: one 128-lane reduce -> per-(image, channel) spatial sum.
        row_tot = jnp.sum(acc_ref[...], axis=-1, keepdims=True)        # (rows_blk, 1)
        # Fused head: row r of w_ref holds W_comb[r % C, :] / (H*W).
        contrib = row_tot * w_ref[...]                                  # (rows_blk, NC_PAD)
        # Sum each image's C row contributions (tiny f32 matmul, once per block).
        logits = jnp.dot(g_ref[...], contrib,
                         preferred_element_type=jnp.float32) + bias_ref[...]
        # Multi-sample dropout (applied after self.linear, as in the reference)
        # collapsed to a single mean keep factor.
        out_ref[...] = logits * mask_ref[...]


@functools.partial(jax.jit, static_argnames=("training",))
def effnet_msd_forward(x_nchw, w_feat, b_feat, w_lin, b_lin, dropout_key,
                       training=True):
    B, C, H, W = x_nchw.shape
    S = H * W
    rows = B * C
    f32 = jnp.float32

    # --- trace-time tiling -----------------------------------------------------
    if B > 8:
        # at least two batch blocks so both v7x TensorCores get work
        b_blk = min(32, _round_up((B + 1) // 2, 8))
    else:
        b_blk = 8
    b_pad = _round_up(B, b_blk)
    rows_blk = b_blk * C

    # Big lane-dense spatial tiles within the per-buffer VMEM budget.
    tile_s = min(MAX_TILE_S,
                 max(LANE, (X_BUF_BYTES // (rows_blk * 4)) // LANE * LANE))
    tile_s = min(tile_s, _round_up(S, LANE))
    n_s = pl.cdiv(S, tile_s)

    # f32 stream straight from HBM; reshape is layout-free (no cast/pad pass).
    x2d = x_nchw.reshape(rows, S)

    # --- fused head: backbone-stub projection (C->1000) o self.linear (1000->5)
    hi = jax.lax.Precision.HIGHEST
    w_comb = jnp.dot(w_feat.astype(f32), w_lin.astype(f32), precision=hi)          # (C, 5)
    b_comb = jnp.dot(b_feat.astype(f32), w_lin.astype(f32), precision=hi) + b_lin  # (1, 5)
    w_comb = jnp.pad(w_comb, ((0, 0), (0, NC_PAD - NUM_CLASSES)))
    b_comb = jnp.pad(b_comb.astype(f32), ((0, 0), (0, NC_PAD - NUM_CLASSES)))
    # Per-row head weight (row r = image*C + c uses w_comb[c]); fold in 1/(H*W).
    w_rows = jnp.tile(w_comb, (b_blk, 1)) * f32(1.0 / S)                # (rows_blk, NC_PAD)
    # 0/1 selection matrix summing each image's C consecutive rows.
    g_sel = jnp.repeat(jnp.eye(b_blk, dtype=f32), C, axis=1)            # (b_blk, rows_blk)

    # Multi-sample dropout collapsed to one mean keep factor per logit element.
    # TODO(synk): pltpu.prng_* would sample this on the HW PRNG in-kernel but has
    # no interpret/CPU lowering, so the masks are drawn in the wrapper.
    if training:
        keep = jax.random.bernoulli(dropout_key, 1.0 - P_DROP,
                                    (N_DROPOUTS, b_pad, NC_PAD))
        mean_mask = keep.astype(f32).sum(axis=0) * f32(
            1.0 / ((1.0 - P_DROP) * N_DROPOUTS))
    else:
        mean_mask = jnp.ones((b_pad, NC_PAD), f32)

    kernel = functools.partial(
        _effnet_msd_kernel,
        total_s=S, total_rows=rows,
        mask_cols=(S % tile_s != 0), mask_rows=(B % b_blk != 0))

    out_padded = pl.pallas_call(
        kernel,
        out_shape=jax.ShapeDtypeStruct((b_pad, NC_PAD), f32),
        grid_spec=pltpu.PrefetchScalarGridSpec(
            num_scalar_prefetch=0,
            grid=(b_pad // b_blk, n_s),
            in_specs=[
                pl.BlockSpec((rows_blk, tile_s), lambda b, s: (b, s)),   # x rows
                pl.BlockSpec((rows_blk, NC_PAD), lambda b, s: (0, 0)),   # w_rows
                pl.BlockSpec((b_blk, rows_blk), lambda b, s: (0, 0)),    # g_sel
                pl.BlockSpec((1, NC_PAD), lambda b, s: (0, 0)),          # b_comb
                pl.BlockSpec((b_blk, NC_PAD), lambda b, s: (b, 0)),      # mean_mask
            ],
            out_specs=pl.BlockSpec((b_blk, NC_PAD), lambda b, s: (b, 0)),
            scratch_shapes=[pltpu.VMEM((rows_blk, LANE), f32)],
        ),
        compiler_params=pltpu.CompilerParams(
            dimension_semantics=("parallel", "arbitrary"),
            vmem_limit_bytes=48 * 1024 * 1024,
        ),
    )(x2d, w_rows, g_sel, b_comb, mean_mask)

    return out_padded[:B, :NUM_CLASSES]


def init_params(key, in_channels):
    k1, k2, k3, k4 = jax.random.split(key, 4)
    # backbone-stub projection C -> 1000
    w_feat = jax.random.normal(k1, (in_channels, FEATURE_DIM), jnp.float32) * 0.05
    b_feat = jax.random.normal(k2, (1, FEATURE_DIM), jnp.float32) * 0.01
    # self.linear = nn.Linear(1000, num_classes); stored as [in, out]
    bound = 1.0 / jnp.sqrt(jnp.float32(FEATURE_DIM))
    w_lin = jax.random.uniform(k3, (FEATURE_DIM, NUM_CLASSES), jnp.float32,
                               minval=-bound, maxval=bound)
    b_lin = jax.random.uniform(k4, (1, NUM_CLASSES), jnp.float32,
                               minval=-bound, maxval=bound)
    return w_feat, b_feat, w_lin, b_lin


if __name__ == "__main__":
    key = jax.random.PRNGKey(0)
    kx, kp, kd = jax.random.split(key, 3)

    B, C, H, W = 2, 4, 16, 16            # small NCHW input
    x = jax.random.normal(kx, (B, C, H, W), jnp.float32)
    w_feat, b_feat, w_lin, b_lin = init_params(kp, C)

    # Training-mode forward (multi-sample dropout active, as in the torch module).
    out = effnet_msd_forward(x, w_feat, b_feat, w_lin, b_lin, kd, training=True)
    out = jax.block_until_ready(out)
    assert out.shape == (B, NUM_CLASSES)
    assert bool(jnp.all(jnp.isfinite(out)))

    # Eval-mode path (dropout = identity) checked against a plain-JAX reference.
    out_eval = effnet_msd_forward(x, w_feat, b_feat, w_lin, b_lin, kd,
                                  training=False)
    out_eval = jax.block_until_ready(out_eval)
    hi = jax.lax.Precision.HIGHEST
    pooled_ref = x.reshape(B, C, H * W).mean(axis=-1)
    model_out_ref = jnp.dot(pooled_ref, w_feat, precision=hi) + b_feat
    ref = jnp.dot(model_out_ref, w_lin, precision=hi) + b_lin
    assert bool(jnp.allclose(out_eval, ref, rtol=2e-2, atol=2e-3))

    print("KERNEL_OK")
</pallas_src>

<mosaic_0001>
module attributes {stable_mosaic.version = 11 : i64} {
  func.func @_effnet_msd_kernel(%arg0: i32, %arg1: i32, %arg2: memref<32x256xf32, #tpu.memory_space<vmem>>, %arg3: memref<32x128xf32, #tpu.memory_space<vmem>>, %arg4: memref<8x32xf32, #tpu.memory_space<vmem>>, %arg5: memref<1x128xf32, #tpu.memory_space<vmem>>, %arg6: memref<8x128xf32, #tpu.memory_space<vmem>>, %arg7: memref<8x128xf32, #tpu.memory_space<vmem>>, %arg8: memref<32x128xf32, #tpu.memory_space<vmem>>) attributes {dimension_semantics = [#tpu.dimension_semantics<parallel>, #tpu.dimension_semantics<arbitrary>], iteration_bounds = array<i64: 1, 1>, scalar_prefetch = 0 : i64, scratch_operands = 1 : i64, tpu.core_type = #tpu.core_type<tc>, window_params = [{transform_indices = @transform_0, window_bounds = array<i64: 32, 256>}, {pipeline_mode = #tpu.pipeline_mode<synchronous>, transform_indices = @transform_1, window_bounds = array<i64: 32, 128>}, {pipeline_mode = #tpu.pipeline_mode<synchronous>, transform_indices = @transform_2, window_bounds = array<i64: 8, 32>}, {pipeline_mode = #tpu.pipeline_mode<synchronous>, transform_indices = @transform_3, window_bounds = array<i64: 1, 128>}, {transform_indices = @transform_4, window_bounds = array<i64: 8, 128>}, {transform_indices = @transform_5, window_bounds = array<i64: 8, 128>}]} {
    %c0 = arith.constant 0 : index
    %c0_0 = arith.constant 0 : index
    %0 = vector.load %arg2[%c0, %c0_0] : memref<32x256xf32, #tpu.memory_space<vmem>>, vector<32x128xf32>
    %c0_1 = arith.constant 0 : index
    %c128 = arith.constant 128 : index
    %1 = vector.load %arg2[%c0_1, %c128] : memref<32x256xf32, #tpu.memory_space<vmem>>, vector<32x128xf32>
    %2 = arith.addf %0, %1 : vector<32x128xf32>
    %3 = tpu.iota {dimensions = array<i32: 0>} : vector<32x128xi32>
    %c32_i32 = arith.constant 32 : i32
    %4 = arith.muli %arg0, %c32_i32 : i32
    %c8_i32 = arith.constant 8 : i32
    %5 = arith.subi %c8_i32, %4 : i32
    %6 = vector.broadcast %5 : i32 to vector<32x128xi32>
    %7 = arith.cmpi slt, %3, %6 : vector<32x128xi32>
    %cst = arith.constant 0.000000e+00 : f32
    %8 = vector.broadcast %cst : f32 to vector<32x128xf32>
    %9 = arith.select %7, %2, %8 : vector<32x128xi1>, vector<32x128xf32>
    %c0_i32 = arith.constant 0 : i32
    %10 = arith.cmpi eq, %arg1, %c0_i32 : i32
    %11 = arith.extui %10 : i1 to i32
    %c0_i32_2 = arith.constant 0 : i32
    %12 = arith.cmpi ne, %11, %c0_i32_2 : i32
    scf.if %12 {
      %c0_7 = arith.constant 0 : index
      %c0_8 = arith.constant 0 : index
      %19 = vector.load %arg8[%c0_7, %c0_8] : memref<32x128xf32, #tpu.memory_space<vmem>>, vector<32x128xf32>
      tpu.vector_store %arg8[%c0_7, %c0_8], %9 {strides = array<i32>} : memref<32x128xf32, #tpu.memory_space<vmem>>, vector<32x128xf32>,
    } else {
    }
    %c0_i32_3 = arith.constant 0 : i32
    %13 = arith.cmpi ne, %arg1, %c0_i32_3 : i32
    %14 = arith.extui %13 : i1 to i32
    %c0_i32_4 = arith.constant 0 : i32
    %15 = arith.cmpi ne, %14, %c0_i32_4 : i32
    scf.if %15 {
      %c0_7 = arith.constant 0 : index
      %c0_8 = arith.constant 0 : index
      %19 = vector.load %arg8[%c0_7, %c0_8] : memref<32x128xf32, #tpu.memory_space<vmem>>, vector<32x128xf32>
      %20 = arith.addf %19, %9 : vector<32x128xf32>
      %c0_9 = arith.constant 0 : index
      %c0_10 = arith.constant 0 : index
      %21 = vector.load %arg8[%c0_9, %c0_10] : memref<32x128xf32, #tpu.memory_space<vmem>>, vector<32x128xf32>
      tpu.vector_store %arg8[%c0_9, %c0_10], %20 {strides = array<i32>} : memref<32x128xf32, #tpu.memory_space<vmem>>, vector<32x128xf32>,
    } else {
    }
    %c0_i32_5 = arith.constant 0 : i32
    %16 = arith.cmpi eq, %arg1, %c0_i32_5 : i32
    %17 = arith.extui %16 : i1 to i32
    %c0_i32_6 = arith.constant 0 : i32
    %18 = arith.cmpi ne, %17, %c0_i32_6 : i32
    scf.if %18 {
      %c0_7 = arith.constant 0 : index
      %c0_8 = arith.constant 0 : index
      %19 = vector.load %arg8[%c0_7, %c0_8] : memref<32x128xf32, #tpu.memory_space<vmem>>, vector<32x128xf32>
      %cst_9 = arith.constant dense<0.000000e+00> : vector<32xf32>
      %20 = vector.multi_reduction <add>, %19, %cst_9 [1] : vector<32x128xf32> to vector<32xf32>
      %21 = vector.shape_cast %20 : vector<32xf32> to vector<32x1xf32>
      %c0_10 = arith.constant 0 : index
      %c0_11 = arith.constant 0 : index
      %22 = vector.load %arg3[%c0_10, %c0_11] : memref<32x128xf32, #tpu.memory_space<vmem>>, vector<32x128xf32>
      %23 = vector.broadcast %21 : vector<32x1xf32> to vector<32x128xf32>
      %24 = arith.mulf %23, %22 : vector<32x128xf32>
      %c0_12 = arith.constant 0 : index
      %c0_13 = arith.constant 0 : index
      %25 = vector.load %arg4[%c0_12, %c0_13] : memref<8x32xf32, #tpu.memory_space<vmem>>, vector<8x32xf32>
      %cst_14 = arith.constant dense<0.000000e+00> : vector<8x128xf32>
      %26 = tpu.matmul %25, %24, %cst_14 {dimension_numbers = #tpu.dot_dimension_numbers<[1], [0], [0], [1], [0, 0, 1, 1], [], []>} : vector<8x32xf32>, vector<32x128xf32>, vector<8x128xf32> -> vector<8x128xf32>
      %c0_15 = arith.constant 0 : index
      %c0_16 = arith.constant 0 : index
      %27 = vector.load %arg5[%c0_15, %c0_16] : memref<1x128xf32, #tpu.memory_space<vmem>>, vector<1x128xf32>
      %28 = vector.broadcast %27 : vector<1x128xf32> to vector<8x128xf32>
      %29 = arith.addf %26, %28 : vector<8x128xf32>
      %c0_17 = arith.constant 0 : index
      %c0_18 = arith.constant 0 : index
      %30 = vector.load %arg6[%c0_17, %c0_18] : memref<8x128xf32, #tpu.memory_space<vmem>>, vector<8x128xf32>
      %31 = arith.mulf %29, %30 : vector<8x128xf32>
      %c0_19 = arith.constant 0 : index
      %c0_20 = arith.constant 0 : index
      %32 = vector.load %arg7[%c0_19, %c0_20] : memref<8x128xf32, #tpu.memory_space<vmem>>, vector<8x128xf32>
      tpu.vector_store %arg7[%c0_19, %c0_20], %31 {strides = array<i32>} : memref<8x128xf32, #tpu.memory_space<vmem>>, vector<8x128xf32>,
    } else {
    }
    return
  }
  func.func @transform_0(%arg0: i32, %arg1: i32) -> (i32, i32) {
    %c0_i32 = arith.constant 0 : i32
    return %arg0, %arg1 : i32, i32
  }
  func.func @transform_1(%arg0: i32, %arg1: i32) -> (i32, i32) {
    %c0_i32 = arith.constant 0 : i32
    %c0_i32_0 = arith.constant 0 : i32
    %c0_i32_1 = arith.constant 0 : i32
    return %c0_i32, %c0_i32_0 : i32, i32
  }
  func.func @transform_2(%arg0: i32, %arg1: i32) -> (i32, i32) {
    %c0_i32 = arith.constant 0 : i32
    %c0_i32_0 = arith.constant 0 : i32
    %c0_i32_1 = arith.constant 0 : i32
    return %c0_i32, %c0_i32_0 : i32, i32
  }
  func.func @transform_3(%arg0: i32, %arg1: i32) -> (i32, i32) {
    %c0_i32 = arith.constant 0 : i32
    %c0_i32_0 = arith.constant 0 : i32
    %c0_i32_1 = arith.constant 0 : i32
    return %c0_i32, %c0_i32_0 : i32, i32
  }
  func.func @transform_4(%arg0: i32, %arg1: i32) -> (i32, i32) {
    %c0_i32 = arith.constant 0 : i32
    %c0_i32_0 = arith.constant 0 : i32
    return %arg0, %c0_i32 : i32, i32
  }
  func.func @transform_5(%arg0: i32, %arg1: i32) -> (i32, i32) {
    %c0_i32 = arith.constant 0 : i32
    %c0_i32_0 = arith.constant 0 : i32
    return %arg0, %c0_i32 : i32, i32
  }
}

</mosaic_0001>

<llo_original>
// kernel: effnet_msd_forward.1
$region0: #{effnet_msd_forward.1}
  #allocation0 [shape = 'u32[]', space=smem, size = 0x4, offset = 0x4, fixed_abs, tag = 'smem constant byte address 0x4 - core index']
  #allocation1 [shape = 'u32[144,128]{1,0:T(1,128)}', space=vmem, size = 0x12000, scoped, tag = 'internal scratch']
  #allocation2 [shape = 'f32[32,128]{1,0:T(8,128)}', space=vmem, size = 0x4000, scoped, tag = 'scratch operand']
  %s0 = inlined_call_operand.vmem [shape: f32[8,256], index: 0, kind: input, shape index: {}]
  %s1 = inlined_call_operand.vmem [shape: f32[32,128], index: 1, kind: input, shape index: {}]
  %s2 = inlined_call_operand.vmem [shape: f32[8,32], index: 2, kind: input, shape index: {}]
  %s3 = inlined_call_operand.vmem [shape: f32[1,128], index: 3, kind: input, shape index: {}]
  %s4 = inlined_call_operand.vmem [shape: f32[8,128], index: 4, kind: input, shape index: {}]
  %s5 = inlined_call_operand.vmem [shape: f32[8,128], index: 5, kind: output, shape index: {}]
  %s6 = sld [smem:[#allocation0]]
  $region42: #{effnet_msd_forward.1} parent=0
    _
  %s8 = ssub.s32 1, %s6
  %s9 = scalar_select 0, %s8, %s6
  // Predicated region
  $region2: #{effnet_msd_forward.1} parent=0 // pred_check
    _
  $region3: #{effnet_msd_forward.1} parent=0 // pred_check_branch
    %11 = sbr.rel (0) target = $region5
  $region4: #{effnet_msd_forward.1} parent=0 // pred_region
    _
  $region5: #{effnet_msd_forward.1} parent=0 // pred_fallthru
    _
  // Predicated region
  $region6: #{effnet_msd_forward.1} parent=0 // pred_check
    _
  $region7: #{effnet_msd_forward.1} parent=0 // pred_check_branch
    %13 = sbr.rel (0) target = $region9
  $region8: #{effnet_msd_forward.1} parent=0 // pred_region
    _
  $region9: #{effnet_msd_forward.1} parent=0 // pred_fallthru
    _
  // Predicated region
  $region10: #{effnet_msd_forward.1} parent=0 // pred_check
    _
  $region11: #{effnet_msd_forward.1} parent=0 // pred_check_branch
    %15 = sbr.rel (0) target = $region13
  $region12: #{effnet_msd_forward.1} parent=0 // pred_region
    _
  $region13: #{effnet_msd_forward.1} parent=0 // pred_fallthru
    _
  // Predicated region
  $region14: #{effnet_msd_forward.1} parent=0 // pred_check
    _
  $region15: #{effnet_msd_forward.1} parent=0 // pred_check_branch
    %17 = sbr.rel (0) target = $region17
  $region16: #{effnet_msd_forward.1} parent=0 // pred_region
    _
  $region17: #{effnet_msd_forward.1} parent=0 // pred_fallthru
    _
  // Predicated region
  $region18: #{effnet_msd_forward.1} parent=0 // pred_check
    _
  $region19: #{effnet_msd_forward.1} parent=0 // pred_check_branch
    %19 = sbr.rel (0) target = $region21
  $region20: #{effnet_msd_forward.1} parent=0 // pred_region
    _
  $region21: #{effnet_msd_forward.1} parent=0 // pred_fallthru
    _
  %v20 = vld [vmem:[%s0] sm:$0xff]
  %v21 = vld [vmem:[%s0 + $0x10] sm:$0xff]
  %v22 = vld [vmem:[%s0 + $0x20] sm:$0xff]
  %v23 = vld [vmem:[%s0 + $0x30] sm:$0xff]
  %v24 = vld [vmem:[%s0 + $0x8] sm:$0xff]
  %v25 = vld [vmem:[%s0 + $0x18] sm:$0xff]
  %v26 = vld [vmem:[%s0 + $0x28] sm:$0xff]
  %v27 = vld [vmem:[%s0 + $0x38] sm:$0xff]
  %v28 = vadd.f32 %v20, %v24
  %v29 = vadd.f32 %v21, %v25
  %v30 = vadd.f32 %v22, %v26
  %v31 = vadd.f32 %v23, %v27
  %v32 = vlaneseq
  %v33 = vshrl.u32 %v32, 7
  %v34 = vadd.s32 %v33, 8
  %v35 = vadd.s32 %v33, 16
  %v36 = vadd.s32 %v33, 24
  %s37 = smul.u32 0, 32
  %s38 = ssub.s32 8, %s37
  %v39 = vstv %s38
  %vm40 = vcmp.lt.s32.totalorder %v33, %v39
  %vm41 = vcmp.lt.s32.totalorder %v34, %v39
  %vm42 = vcmp.lt.s32.totalorder %v35, %v39
  %vm43 = vcmp.lt.s32.totalorder %v36, %v39
  %v44 = vsel %vm40, %v28, 0.0
  %v45 = vsel %vm41, %v29, 0.0
  %v46 = vsel %vm42, %v30, 0.0
  %v47 = vsel %vm43, %v31, 0.0
  %p48 = scmp.eq.s32.totalorder 0, 0
  // Predicated region
  $region22: #{effnet_msd_forward.1} parent=0 // pred_check
    %p49 = pneg %p48
  $region23: #{effnet_msd_forward.1} parent=0 // pred_check_branch
    %51 = sbr.rel (%p49) target = $region25
  $region24: #{effnet_msd_forward.1} parent=0 // pred_region
    %52 = vst [vmem:[#allocation2] sm:$0xff] %v44
    %53 = vst [vmem:[#allocation2 + $0x8] sm:$0xff] %v45
    %54 = vst [vmem:[#allocation2 + $0x10] sm:$0xff] %v46
    %55 = vst [vmem:[#allocation2 + $0x18] sm:$0xff] %v47
  $region25: #{effnet_msd_forward.1} parent=0 // pred_fallthru
    _
  %p56 = scmp.ne.s32.totalorder 0, 0
  // Predicated region
  $region26: #{effnet_msd_forward.1} parent=0 // pred_check
    %p57 = pneg %p56
  $region27: #{effnet_msd_forward.1} parent=0 // pred_check_branch
    %59 = sbr.rel (%p57) target = $region29
  $region28: #{effnet_msd_forward.1} parent=0 // pred_region
    %v60 = vld [vmem:[#allocation2] sm:$0xff]
    %v61 = vld [vmem:[#allocation2 + $0x8] sm:$0xff]
    %v62 = vld [vmem:[#allocation2 + $0x10] sm:$0xff]
    %v63 = vld [vmem:[#allocation2 + $0x18] sm:$0xff]
    %v64 = vadd.f32 %v60, %v44
    %v65 = vadd.f32 %v61, %v45
    %v66 = vadd.f32 %v62, %v46
    %v67 = vadd.f32 %v63, %v47
    %68 = vst [vmem:[#allocation2] sm:$0xff] %v64
    %69 = vst [vmem:[#allocation2 + $0x8] sm:$0xff] %v65
    %70 = vst [vmem:[#allocation2 + $0x10] sm:$0xff] %v66
    %71 = vst [vmem:[#allocation2 + $0x18] sm:$0xff] %v67
  $region29: #{effnet_msd_forward.1} parent=0 // pred_fallthru
    _
  // Predicated region
  $region30: #{effnet_msd_forward.1} parent=0 // pred_check
    %p72 = pneg %p48
  $region31: #{effnet_msd_forward.1} parent=0 // pred_check_branch
    %74 = sbr.rel (%p72) target = $region33
  $region32: #{effnet_msd_forward.1} parent=0 // pred_region
    %v75 = vld [vmem:[#allocation2] sm:$0xff]
    %v76 = vld [vmem:[#allocation2 + $0x8] sm:$0xff]
    %v77 = vld [vmem:[#allocation2 + $0x10] sm:$0xff]
    %v78 = vld [vmem:[#allocation2 + $0x18] sm:$0xff]
    %79 = vadd.xlane.f32.xlu0 %v75
    %v80 = vpop.xlane.xlu0 %79
    %81 = vadd.xlane.f32.xlu0 %v76
    %v82 = vpop.xlane.xlu0 %81
    %83 = vadd.xlane.f32.xlu0 %v77
    %v84 = vpop.xlane.xlu0 %83
    %85 = vadd.xlane.f32.xlu0 %v78
    %v86 = vpop.xlane.xlu0 %85
    %v87 = vld [vmem:[%s1] sm:$0xff]
    %v88 = vld [vmem:[%s1 + $0x8] sm:$0xff]
    %v89 = vld [vmem:[%s1 + $0x10] sm:$0xff]
    %v90 = vld [vmem:[%s1 + $0x18] sm:$0xff]
    %v91 = vmul.f32 %v80, %v87
    %v92 = vmul.f32 %v82, %v88
    %v93 = vmul.f32 %v84, %v89
    %v94 = vmul.f32 %v86, %v90
    %v95 = vld [vmem:[%s2] sm:$0xff]
    %v96 = vld [vmem:[%s3] sm:$0x1]
    %v98 = vlaneseq
    %v99 = vshrl.u32 %v98, 7
    %v100 = vsub.s32 0, %v99
    %v101 = vrot.slane %v96, %v100
    %vm103 = vcmask 261120
    %v105 = vsel %vm103, %v95, 0
    %107 = vmatprep.subr.mxu0 0.0
    %108 = vmatpush1.msra.mxu0 %v91
    %109 = vmatprep.subr.mxu0 0.0
    %110 = vmatpush1.msra.mxu0 %v92
    %111 = vmatprep.subr.mxu0 0.0
    %112 = vmatpush1.msra.mxu0 %v93
    %113 = vmatprep.subr.mxu0 0.0
    %114 = vmatpush1.msra.mxu0 %v94
    %115 = vmatprep.subr.mxu0 0.0
    %116 = vmatpush1.msra.mxu0 0.0
    %117 = vmatprep.subr.mxu0 0.0
    %118 = vmatpush1.msra.mxu0 0.0
    %119 = vmatprep.subr.mxu0 0.0
    %120 = vmatpush1.msra.mxu0 0.0
    %121 = vmatprep.subr.mxu0 0.0
    %122 = vmatpush1.msra.mxu0 0.0
    %123 = vmatprep.subr.mxu0 0.0
    %124 = vmatpush1.msra.mxu0 0.0
    %125 = vmatprep.subr.mxu0 0.0
    %126 = vmatpush1.msra.mxu0 0.0
    %127 = vmatprep.subr.mxu0 0.0
    %128 = vmatpush1.msra.mxu0 0.0
    %129 = vmatprep.subr.mxu0 0.0
    %130 = vmatpush1.msra.mxu0 0.0
    %131 = vmatprep.subr.mxu0 0.0
    %132 = vmatpush1.msra.mxu0 0.0
    %133 = vmatprep.subr.mxu0 0.0
    %134 = vmatpush1.msra.mxu0 0.0
    %135 = vmatprep.subr.mxu0 0.0
    %136 = vmatpush1.msra.mxu0 0.0
    %137 = vmatprep.subr.mxu0 0.0
    %138 = vmatpush1.msra.mxu0 0.0
    %139 = vmatprep.subr.mxu0 0.0
    %140 = vmatpush1.msra.mxu0 0.0
    %141 = vmatprep.subr.mxu0 0.0
    %142 = vmatpush1.msra.mxu0 0.0
    %143 = vmatprep.subr.mxu0 0.0
    %144 = vmatpush1.msra.mxu0 0.0
    %145 = vmatprep.subr.mxu0 0.0
    %146 = vmatpush1.msra.mxu0 0.0
    %147 = vmatprep.subr.mxu0 0.0
    %148 = vmatpush1.msra.mxu0 0.0
    %149 = vmatprep.subr.mxu0 0.0
    %150 = vmatpush1.msra.mxu0 0.0
    %151 = vmatprep.subr.mxu0 0.0
    %152 = vmatpush1.msra.mxu0 0.0
    %153 = vmatprep.subr.mxu0 0.0
    %154 = vmatpush1.msra.mxu0 0.0
    %155 = vmatprep.subr.mxu0 0.0
    %156 = vmatpush1.msra.mxu0 0.0
    %157 = vmatprep.subr.mxu0 0.0
    %158 = vmatpush1.msra.mxu0 0.0
    %159 = vmatprep.subr.mxu0 0.0
    %160 = vmatpush1.msra.mxu0 0.0
    %161 = vmatprep.subr.mxu0 0.0
    %162 = vmatpush1.msra.mxu0 0.0
    %163 = vmatprep.subr.mxu0 0.0
    %164 = vmatpush1.msra.mxu0 0.0
    %165 = vmatprep.subr.mxu0 0.0
    %166 = vmatpush1.msra.mxu0 0.0
    %167 = vmatprep.subr.mxu0 0.0
    %168 = vmatpush1.msra.mxu0 0.0
    %169 = vmatprep.subr.mxu0 0.0
    %170 = vmatpush1.msra.mxu0 0.0
    %171 = vmatprep.mubr.f32.mxu0 0.0
    %172 = vmatmul.mubr.f32.gmra.mrb[0].mxu0 %v105
    %v173 = vpop.f32.mrb[0].mxu0
    %v174 = vadd.f32 %v101, %v173
    %v175 = vpop.f32.mrb[0].mxu0
    %176 = vdwg.mxu0
    %v177 = vld [vmem:[%s4] sm:$0xff]
    %v178 = vmul.f32 %v174, %v177
    %179 = vst [vmem:[%s5] sm:$0xff] %v178
  $region33: #{effnet_msd_forward.1} parent=0 // pred_fallthru
    _
  // Predicated region
  $region34: #{effnet_msd_forward.1} parent=0 // pred_check
    _
  $region35: #{effnet_msd_forward.1} parent=0 // pred_check_branch
    %181 = sbr.rel (0) target = $region37
  $region36: #{effnet_msd_forward.1} parent=0 // pred_region
    _
  $region37: #{effnet_msd_forward.1} parent=0 // pred_fallthru
    _
  // Predicated region
  $region38: #{effnet_msd_forward.1} parent=0 // pred_check
    _
  $region39: #{effnet_msd_forward.1} parent=0 // pred_check_branch
    %183 = sbr.rel (0) target = $region41
  $region40: #{effnet_msd_forward.1} parent=0 // pred_region
    _
  $region41: #{effnet_msd_forward.1} parent=0 // pred_fallthru
    _

</llo_original>
